<compile_context>
chip_gen: v7x
topology: tpu7x:2x2x1
jax: 0.10.0
libtpu: 0.0.40
codegen_flags: <defaults>
</compile_context>

<pallas_src>
import jax
import jax.numpy as jnp
from jax import lax
from jax.experimental import pallas as pl
from jax.experimental.pallas import tpu as pltpu

NEG_SLOPE = 0.01
EPS = 1e-5


def _leaky(v):
    return jnp.where(v > 0, v, NEG_SLOPE * v)


def factorized_reduce_kernel(x1_ref, x2_ref, w_ref, g_ref, b_ref, o_ref):
    # x1_ref, x2_ref : (1, C_in, S)   strided input samples (branch 1 / branch 2),
    #                                 channels on sublanes, spatial S on lanes.
    # w_ref          : (C_half, C_in) 1x1x1 conv weight.
    # g_ref, b_ref   : (C_out, 1)     InstanceNorm affine params (both halves).
    # o_ref          : (1, C_out, S)  both branches, channel-concatenated.
    w = w_ref[...]
    a = _leaky(x1_ref[0])          # keep input dtype: bf16 feeds the MXU directly
    b = _leaky(x2_ref[0])

    # MXU: (C_half, C_in) x (C_in, S) -> (C_half, S). S is the lane-dense N dim.
    y1 = jnp.dot(w, a, preferred_element_type=jnp.float32)
    y2 = jnp.dot(w, b, preferred_element_type=jnp.float32)
    y = jnp.concatenate([y1, y2], axis=0)                     # (C_out, S), f32

    # InstanceNorm over the spatial (lane) axis: single pass of sum / sum-of-squares.
    inv_n = 1.0 / y.shape[1]                                  # compile-time constant
    s1 = jnp.sum(y, axis=1, keepdims=True)                    # (C_out, 1)
    s2 = jnp.sum(y * y, axis=1, keepdims=True)
    mean = s1 * inv_n
    var = jnp.maximum(s2 * inv_n - mean * mean, 0.0)          # biased variance
    y = (y - mean) * lax.rsqrt(var + EPS)
    y = y * g_ref[...] + b_ref[...]
    o_ref[0] = _leaky(y).astype(o_ref.dtype)


def factorized_reduce(x, w, gamma, beta):
    """x: (N, C_in, D, H, W) NCDHW. w: (C_half, C_in, 1, 1, 1). gamma/beta: (C_out,)."""
    N, C_in, D, H, W = x.shape
    C_half = w.shape[0]
    C_out = 2 * C_half
    assert H % 2 == 0 and W % 2 == 0, "H, W must be even for the two branches to align"
    Do, Ho, Wo = (D - 1) // 2 + 1, H // 2, W // 2
    S = Do * Ho * Wo

    # Shared D-stride slice: the two branches only differ in (H, W) phase, so a
    # single strided pass over x feeds both gathers. No transposes are needed —
    # channels already precede the spatial dims, so flattening is a pure reshape.
    xd = x[:, :, ::2]                                         # (N, C_in, Do, H, W)
    x1 = xd[:, :, :, ::2, ::2].reshape(N, C_in, S)            # samples (2d, 2h,   2w)
    x2 = xd[:, :, :, 1::2, 1::2].reshape(N, C_in, S)          # samples (2d, 2h+1, 2w+1)
    # TODO(synk): for very large volumes, fold this gather into the kernel via a
    # strided manual DMA (memory_space=pl.ANY) and add an S-tiling grid axis with
    # running sum / sum-of-squares accumulation for the InstanceNorm statistics.

    w2 = w.reshape(C_half, C_in)
    g = gamma.reshape(C_out, 1).astype(jnp.float32)
    b = beta.reshape(C_out, 1).astype(jnp.float32)

    blk_x = pl.BlockSpec((1, C_in, S), lambda n: (n, 0, 0))
    blk_w = pl.BlockSpec((C_half, C_in), lambda n: (0, 0))
    blk_p = pl.BlockSpec((C_out, 1), lambda n: (0, 0))
    blk_o = pl.BlockSpec((1, C_out, S), lambda n: (n, 0, 0))

    # Scoped-VMEM budget: double-buffered input/output tiles + f32 intermediates,
    # with headroom, clamped to the tightest physical VMEM (v7x: 64 MiB).
    itemsize = jnp.dtype(x.dtype).itemsize
    block_bytes = (2 * C_in + C_out) * S * itemsize
    vmem_limit = int(min(max(4 * block_bytes + (4 << 20), 16 << 20), 64 << 20))

    out = pl.pallas_call(
        factorized_reduce_kernel,
        out_shape=jax.ShapeDtypeStruct((N, C_out, S), x.dtype),
        grid_spec=pltpu.PrefetchScalarGridSpec(
            num_scalar_prefetch=0,
            grid=(N,),
            in_specs=[blk_x, blk_x, blk_w, blk_p, blk_p],
            out_specs=blk_o,
        ),
        compiler_params=pltpu.CompilerParams(
            dimension_semantics=("parallel",),
            vmem_limit_bytes=vmem_limit),
    )(x1, x2, w2, g, b)

    # (N, C_out, S) -> (N, C_out, Do, Ho, Wo): pure reshape, no transpose/concat.
    return out.reshape(N, C_out, Do, Ho, Wo)


def reference(x, w, gamma, beta):
    """Pure-JAX reference mirroring the PyTorch module exactly (NCDHW)."""
    xr = _leaky(x)
    y = xr[:, :, :, 1:, 1:]
    dn = lax.conv_dimension_numbers(xr.shape, w.shape, ('NCDHW', 'OIDHW', 'NCDHW'))
    c1 = lax.conv_general_dilated(xr, w, (2, 2, 2), 'VALID', dimension_numbers=dn)
    c2 = lax.conv_general_dilated(y, w, (2, 2, 2), 'VALID', dimension_numbers=dn)
    out = jnp.concatenate([c1, c2], axis=1)
    mean = out.mean(axis=(2, 3, 4), keepdims=True)
    var = ((out - mean) ** 2).mean(axis=(2, 3, 4), keepdims=True)
    out = (out - mean) / jnp.sqrt(var + EPS)
    out = out * gamma.reshape(1, -1, 1, 1, 1) + beta.reshape(1, -1, 1, 1, 1)
    return _leaky(out)


if __name__ == "__main__":
    key = jax.random.PRNGKey(0)
    k1, k2, k3, k4 = jax.random.split(key, 4)

    N, C_in, D, H, W = 2, 4, 8, 16, 16
    C_out = 4
    C_half = C_out // 2

    x = jax.random.normal(k1, (N, C_in, D, H, W), dtype=jnp.float32)
    # Conv3d(C_in, C_out//2, kernel_size=1, stride=2, padding=0, bias=False) weight
    w = 0.1 * jax.random.normal(k2, (C_half, C_in, 1, 1, 1), dtype=jnp.float32)
    # InstanceNorm3d(C_out, affine=True) parameters (deterministic, non-trivial)
    gamma = 1.0 + 0.1 * jax.random.normal(k3, (C_out,), dtype=jnp.float32)
    beta = 0.1 * jax.random.normal(k4, (C_out,), dtype=jnp.float32)

    out = factorized_reduce(x, w, gamma, beta)
    jax.block_until_ready(out)

    assert out.shape == (N, C_out, D // 2, H // 2, W // 2), out.shape
    ref = reference(x, w, gamma, beta)
    assert jnp.allclose(out, ref, atol=1e-4, rtol=1e-4), \
        float(jnp.max(jnp.abs(out - ref)))

    print("KERNEL_OK")
</pallas_src>

<mosaic_0001>
module attributes {stable_mosaic.version = 11 : i64} {
  func.func @factorized_reduce_kernel(%arg0: i32, %arg1: memref<1x4x256xf32, #tpu.memory_space<vmem>>, %arg2: memref<1x4x256xf32, #tpu.memory_space<vmem>>, %arg3: memref<2x4xf32, #tpu.memory_space<vmem>>, %arg4: memref<4x1xf32, #tpu.memory_space<vmem>>, %arg5: memref<4x1xf32, #tpu.memory_space<vmem>>, %arg6: memref<1x4x256xf32, #tpu.memory_space<vmem>>) attributes {dimension_semantics = [#tpu.dimension_semantics<parallel>], iteration_bounds = array<i64: 2>, scalar_prefetch = 0 : i64, scratch_operands = 0 : i64, tpu.core_type = #tpu.core_type<tc>, window_params = [{transform_indices = @transform_0, window_bounds = array<i64: 1, 4, 256>}, {transform_indices = @transform_1, window_bounds = array<i64: 1, 4, 256>}, {pipeline_mode = #tpu.pipeline_mode<synchronous>, transform_indices = @transform_2, window_bounds = array<i64: 2, 4>}, {pipeline_mode = #tpu.pipeline_mode<synchronous>, transform_indices = @transform_3, window_bounds = array<i64: 4, 1>}, {pipeline_mode = #tpu.pipeline_mode<synchronous>, transform_indices = @transform_4, window_bounds = array<i64: 4, 1>}, {transform_indices = @transform_5, window_bounds = array<i64: 1, 4, 256>}]} {
    %c0 = arith.constant 0 : index
    %c0_0 = arith.constant 0 : index
    %0 = vector.load %arg3[%c0, %c0_0] : memref<2x4xf32, #tpu.memory_space<vmem>>, vector<2x4xf32>
    %c0_1 = arith.constant 0 : index
    %c0_2 = arith.constant 0 : index
    %c0_3 = arith.constant 0 : index
    %1 = vector.load %arg1[%c0_1, %c0_2, %c0_3] : memref<1x4x256xf32, #tpu.memory_space<vmem>>, vector<1x4x256xf32>
    %2 = vector.shape_cast %1 : vector<1x4x256xf32> to vector<4x256xf32>
    %cst = arith.constant 0.000000e+00 : f32
    %3 = vector.broadcast %cst : f32 to vector<4x256xf32>
    %4 = arith.cmpf ogt, %2, %3 : vector<4x256xf32>
    %cst_4 = arith.constant 0.00999999977 : f32
    %5 = vector.broadcast %cst_4 : f32 to vector<4x256xf32>
    %6 = arith.mulf %5, %2 : vector<4x256xf32>
    %7 = arith.select %4, %2, %6 : vector<4x256xi1>, vector<4x256xf32>
    %c0_5 = arith.constant 0 : index
    %c0_6 = arith.constant 0 : index
    %c0_7 = arith.constant 0 : index
    %8 = vector.load %arg2[%c0_5, %c0_6, %c0_7] : memref<1x4x256xf32, #tpu.memory_space<vmem>>, vector<1x4x256xf32>
    %9 = vector.shape_cast %8 : vector<1x4x256xf32> to vector<4x256xf32>
    %cst_8 = arith.constant 0.000000e+00 : f32
    %10 = vector.broadcast %cst_8 : f32 to vector<4x256xf32>
    %11 = arith.cmpf ogt, %9, %10 : vector<4x256xf32>
    %cst_9 = arith.constant 0.00999999977 : f32
    %12 = vector.broadcast %cst_9 : f32 to vector<4x256xf32>
    %13 = arith.mulf %12, %9 : vector<4x256xf32>
    %14 = arith.select %11, %9, %13 : vector<4x256xi1>, vector<4x256xf32>
    %cst_10 = arith.constant dense<0.000000e+00> : vector<2x256xf32>
    %15 = tpu.matmul %0, %7, %cst_10 {dimension_numbers = #tpu.dot_dimension_numbers<[1], [0], [0], [1], [0, 0, 1, 1], [], []>} : vector<2x4xf32>, vector<4x256xf32>, vector<2x256xf32> -> vector<2x256xf32>
    %cst_11 = arith.constant dense<0.000000e+00> : vector<2x256xf32>
    %16 = tpu.matmul %0, %14, %cst_11 {dimension_numbers = #tpu.dot_dimension_numbers<[1], [0], [0], [1], [0, 0, 1, 1], [], []>} : vector<2x4xf32>, vector<4x256xf32>, vector<2x256xf32> -> vector<2x256xf32>
    %17 = tpu.concatenate %15, %16 in 0 : vector<2x256xf32>, vector<2x256xf32> -> vector<4x256xf32>
    %cst_12 = arith.constant dense<0.000000e+00> : vector<4xf32>
    %18 = vector.multi_reduction <add>, %17, %cst_12 [1] : vector<4x256xf32> to vector<4xf32>
    %19 = vector.shape_cast %18 : vector<4xf32> to vector<4x1xf32>
    %20 = arith.mulf %17, %17 : vector<4x256xf32>
    %cst_13 = arith.constant dense<0.000000e+00> : vector<4xf32>
    %21 = vector.multi_reduction <add>, %20, %cst_13 [1] : vector<4x256xf32> to vector<4xf32>
    %22 = vector.shape_cast %21 : vector<4xf32> to vector<4x1xf32>
    %cst_14 = arith.constant 3.906250e-03 : f32
    %23 = vector.broadcast %cst_14 : f32 to vector<4x1xf32>
    %24 = arith.mulf %19, %23 : vector<4x1xf32>
    %cst_15 = arith.constant 3.906250e-03 : f32
    %25 = vector.broadcast %cst_15 : f32 to vector<4x1xf32>
    %26 = arith.mulf %22, %25 : vector<4x1xf32>
    %27 = arith.mulf %24, %24 : vector<4x1xf32>
    %28 = arith.subf %26, %27 : vector<4x1xf32>
    %cst_16 = arith.constant 0.000000e+00 : f32
    %29 = vector.broadcast %cst_16 : f32 to vector<4x1xf32>
    %30 = arith.maximumf %28, %29 : vector<4x1xf32>
    %31 = vector.broadcast %24 : vector<4x1xf32> to vector<4x256xf32>
    %32 = arith.subf %17, %31 : vector<4x256xf32>
    %cst_17 = arith.constant 9.99999974E-6 : f32
    %33 = vector.broadcast %cst_17 : f32 to vector<4x1xf32>
    %34 = arith.addf %30, %33 : vector<4x1xf32>
    %35 = math.rsqrt %34 : vector<4x1xf32>
    %36 = vector.broadcast %35 : vector<4x1xf32> to vector<4x256xf32>
    %37 = arith.mulf %32, %36 : vector<4x256xf32>
    %c0_18 = arith.constant 0 : index
    %c0_19 = arith.constant 0 : index
    %38 = vector.load %arg4[%c0_18, %c0_19] : memref<4x1xf32, #tpu.memory_space<vmem>>, vector<4x1xf32>
    %39 = vector.broadcast %38 : vector<4x1xf32> to vector<4x256xf32>
    %40 = arith.mulf %37, %39 : vector<4x256xf32>
    %c0_20 = arith.constant 0 : index
    %c0_21 = arith.constant 0 : index
    %41 = vector.load %arg5[%c0_20, %c0_21] : memref<4x1xf32, #tpu.memory_space<vmem>>, vector<4x1xf32>
    %42 = vector.broadcast %41 : vector<4x1xf32> to vector<4x256xf32>
    %43 = arith.addf %40, %42 : vector<4x256xf32>
    %cst_22 = arith.constant 0.000000e+00 : f32
    %44 = vector.broadcast %cst_22 : f32 to vector<4x256xf32>
    %45 = arith.cmpf ogt, %43, %44 : vector<4x256xf32>
    %cst_23 = arith.constant 0.00999999977 : f32
    %46 = vector.broadcast %cst_23 : f32 to vector<4x256xf32>
    %47 = arith.mulf %46, %43 : vector<4x256xf32>
    %48 = arith.select %45, %43, %47 : vector<4x256xi1>, vector<4x256xf32>
    %c0_24 = arith.constant 0 : index
    %c0_25 = arith.constant 0 : index
    %c0_26 = arith.constant 0 : index
    %49 = vector.load %arg6[%c0_24, %c0_25, %c0_26] : memref<1x4x256xf32, #tpu.memory_space<vmem>>, vector<1x4x256xf32>
    %50 = vector.shape_cast %49 : vector<1x4x256xf32> to vector<4x256xf32>
    %51 = vector.shape_cast %48 : vector<4x256xf32> to vector<1x4x256xf32>
    tpu.vector_store %arg6[%c0_24, %c0_25, %c0_26], %51 {strides = array<i32>} : memref<1x4x256xf32, #tpu.memory_space<vmem>>, vector<1x4x256xf32>,
    return
  }
  func.func @transform_0(%arg0: i32) -> (i32, i32, i32) {
    %c0_i32 = arith.constant 0 : i32
    %c0_i32_0 = arith.constant 0 : i32
    %c0_i32_1 = arith.constant 0 : i32
    return %arg0, %c0_i32, %c0_i32_0 : i32, i32, i32
  }
  func.func @transform_1(%arg0: i32) -> (i32, i32, i32) {
    %c0_i32 = arith.constant 0 : i32
    %c0_i32_0 = arith.constant 0 : i32
    %c0_i32_1 = arith.constant 0 : i32
    return %arg0, %c0_i32, %c0_i32_0 : i32, i32, i32
  }
  func.func @transform_2(%arg0: i32) -> (i32, i32) {
    %c0_i32 = arith.constant 0 : i32
    %c0_i32_0 = arith.constant 0 : i32
    %c0_i32_1 = arith.constant 0 : i32
    return %c0_i32, %c0_i32_0 : i32, i32
  }
  func.func @transform_3(%arg0: i32) -> (i32, i32) {
    %c0_i32 = arith.constant 0 : i32
    %c0_i32_0 = arith.constant 0 : i32
    %c0_i32_1 = arith.constant 0 : i32
    return %c0_i32, %c0_i32_0 : i32, i32
  }
  func.func @transform_4(%arg0: i32) -> (i32, i32) {
    %c0_i32 = arith.constant 0 : i32
    %c0_i32_0 = arith.constant 0 : i32
    %c0_i32_1 = arith.constant 0 : i32
    return %c0_i32, %c0_i32_0 : i32, i32
  }
  func.func @transform_5(%arg0: i32) -> (i32, i32, i32) {
    %c0_i32 = arith.constant 0 : i32
    %c0_i32_0 = arith.constant 0 : i32
    %c0_i32_1 = arith.constant 0 : i32
    return %arg0, %c0_i32, %c0_i32_0 : i32, i32, i32
  }
}

</mosaic_0001>

<llo_original>
// kernel: tpu_custom_call.1
$region0: #{tpu_custom_call.1}
  #allocation0 [shape = 'u32[]', space=smem, size = 0x4, offset = 0x4, fixed_abs, tag = 'smem constant byte address 0x4 - core index']
  #allocation1 [shape = 'u32[144,128]{1,0:T(1,128)}', space=vmem, size = 0x12000, scoped, tag = 'internal scratch']
  %s0 = inlined_call_operand.hbm [shape: f32[2,4,256], index: 0, kind: input, shape index: {}]
  %s1 = inlined_call_operand.hbm [shape: f32[2,4,256], index: 1, kind: input, shape index: {}]
  %s2 = inlined_call_operand.vmem [shape: f32[2,4], index: 2, kind: input, shape index: {}]
  %s3 = inlined_call_operand.vmem [shape: f32[4,1], index: 3, kind: input, shape index: {}]
  %s4 = inlined_call_operand.vmem [shape: f32[4,1], index: 4, kind: input, shape index: {}]
  %s5 = inlined_call_operand.hbm [shape: f32[2,4,256], index: 5, kind: output, shape index: {}]
  %s6 = sld [smem:[#allocation0]]
  $region61: #{tpu_custom_call.1} parent=0
    _
  %s8 = ssub.s32 1, %s6
  %s9 = scalar_select 0, %s8, %s6
  $region1: #{tpu_custom_call.1} parent=0
    #allocation2 [shape = 'u8[8192]{0}', space=vmem, size = 0x2000, scoped, tag = 'input window, operand 0']
    #allocation3 [shape = 's32[2]{0}', space=sflag, size = 0x8, scoped, tag = 'scoped memory for tpu_custom_call.1']
    #allocation4 [shape = 's32[2]{0}', space=sflag, size = 0x8, scoped, tag = 'scoped memory for tpu_custom_call.1']
    #allocation5 [shape = 'u8[8192]{0}', space=vmem, size = 0x2000, scoped, tag = 'input window, operand 1']
    #allocation6 [shape = 's32[2]{0}', space=sflag, size = 0x8, scoped, tag = 'scoped memory for tpu_custom_call.1']
    #allocation7 [shape = 'u8[8192]{0}', space=vmem, size = 0x2000, scoped, tag = 'output window, operand 0']
    %10 = vsyncpa [#allocation3], 0
    %s11 = scalar_lea.sflag [#allocation3], 1
    %12 = vsyncpa %s11, 0
    %13 = vsyncpa [#allocation6], 0
    %s14 = scalar_lea.sflag [#allocation6], 1
    %15 = vsyncpa %s14, 0
    %16 = vsyncpa [#allocation4], 0
    %s17 = scalar_lea.sflag [#allocation4], 1
    %18 = vsyncpa %s17, 0
    loop: start=0, step=1, limit=4
    $region2: #{tpu_custom_call.1} parent=1 // loop_pre_header
      _
    $region3: #{tpu_custom_call.1} parent=1 // loop_header
      %s20 = sphi 0, %s24
      %p21 = scmp.ge.s32.totalorder %s20, 4
      %s30 = sphi 0, %s32
      %s33 = sphi 0, %s30
      %s34 = sphi 0, %s33
      %s50 = sphi 0, %s34
      %s56 = sphi 0, %s58
      %s59 = sphi 0, %s56
      %s60 = sphi 0, %s59
      %s76 = sphi 0, %s60
      %s80 = sphi 0, %s80
      %s82 = sphi 0, %s80
      %s83 = sphi 0, %s82
      %s97 = sphi 0, %s83
      %s101 = sphi 0, %s101
      %s103 = sphi 0, %s101
      %s104 = sphi 0, %s103
      %s118 = sphi 0, %s104
      %s122 = sphi 0, %s122
      %s124 = sphi 0, %s122
      %s125 = sphi 0, %s124
      %s139 = sphi 0, %s125
      %s145 = sphi 0, %s147
      %s148 = sphi 0, %s145
      %s149 = sphi 0, %s148
      %s165 = sphi 0, %s149
    $region4: #{tpu_custom_call.1} parent=1 // loop_header_branch
      %23 = sbr.rel (%p21) target = $region8
    $region5: #{tpu_custom_call.1} parent=1 // loop_body
      %s25 = ssub.s32 %s20, 1
      %s26 = ssub.s32 %s20, 2
      %s27 = sadd.s32 %s20, 1
      %s28 = ssub.s32 %s20, %s27
      %p29 = scmp.eq.s32.totalorder %s28, 0
      %s31 = sadd.s32 %s30, 1
      %s32 = scalar_select %p29, %s30, %s31
      %p35 = pneg %p29
      %p36 = scmp.eq.s32.totalorder %s20, 1
      %p37 = por %p35, %p36
      %p38 = scmp.ne.s32.totalorder %s30, %s33
      %p39 = scmp.eq.s32.totalorder %s20, 0
      %p40 = por %p38, %p39
      %p41 = scmp.ne.s32.totalorder %s30, %s33
      %p42 = scmp.eq.s32.totalorder %s25, 1
      %p43 = por %p41, %p42
      %p44 = scmp.ne.s32.totalorder %s33, %s34
      %p45 = scmp.eq.s32.totalorder %s25, 0
      %p46 = por %p44, %p45
      %p47 = scmp.ne.s32.totalorder %s33, %s34
      %p48 = scmp.eq.s32.totalorder %s26, 1
      %p49 = por %p47, %p48
      %p51 = scmp.ne.s32.totalorder %s34, %s50
      %p52 = scmp.eq.s32.totalorder %s26, 0
      %p53 = por %p51, %p52
      %s54 = ssub.s32 %s20, %s27
      %p55 = scmp.eq.s32.totalorder %s54, 0
      %s57 = sadd.s32 %s56, 1
      %s58 = scalar_select %p55, %s56, %s57
      %p61 = pneg %p55
      %p62 = scmp.eq.s32.totalorder %s20, 1
      %p63 = por %p61, %p62
      %p64 = scmp.ne.s32.totalorder %s56, %s59
      %p65 = scmp.eq.s32.totalorder %s20, 0
      %p66 = por %p64, %p65
      %p67 = scmp.ne.s32.totalorder %s56, %s59
      %p68 = scmp.eq.s32.totalorder %s25, 1
      %p69 = por %p67, %p68
      %p70 = scmp.ne.s32.totalorder %s59, %s60
      %p71 = scmp.eq.s32.totalorder %s25, 0
      %p72 = por %p70, %p71
      %p73 = scmp.ne.s32.totalorder %s59, %s60
      %p74 = scmp.eq.s32.totalorder %s26, 1
      %p75 = por %p73, %p74
      %p77 = scmp.ne.s32.totalorder %s60, %s76
      %p78 = scmp.eq.s32.totalorder %s26, 0
      %p79 = por %p77, %p78
      %s81 = sadd.s32 %s80, 1
      %p84 = scmp.eq.s32.totalorder %s20, 1
      %p85 = scmp.ne.s32.totalorder %s80, %s82
      %p86 = scmp.eq.s32.totalorder %s20, 0
      %p87 = por %p85, %p86
      %p88 = scmp.ne.s32.totalorder %s80, %s82
      %p89 = scmp.eq.s32.totalorder %s25, 1
      %p90 = por %p88, %p89
      %p91 = scmp.ne.s32.totalorder %s82, %s83
      %p92 = scmp.eq.s32.totalorder %s25, 0
      %p93 = por %p91, %p92
      %p94 = scmp.ne.s32.totalorder %s82, %s83
      %p95 = scmp.eq.s32.totalorder %s26, 1
      %p96 = por %p94, %p95
      %p98 = scmp.ne.s32.totalorder %s83, %s97
      %p99 = scmp.eq.s32.totalorder %s26, 0
      %p100 = por %p98, %p99
      %s102 = sadd.s32 %s101, 1
      %p105 = scmp.eq.s32.totalorder %s20, 1
      %p106 = scmp.ne.s32.totalorder %s101, %s103
      %p107 = scmp.eq.s32.totalorder %s20, 0
      %p108 = por %p106, %p107
      %p109 = scmp.ne.s32.totalorder %s101, %s103
      %p110 = scmp.eq.s32.totalorder %s25, 1
      %p111 = por %p109, %p110
      %p112 = scmp.ne.s32.totalorder %s103, %s104
      %p113 = scmp.eq.s32.totalorder %s25, 0
      %p114 = por %p112, %p113
      %p115 = scmp.ne.s32.totalorder %s103, %s104
      %p116 = scmp.eq.s32.totalorder %s26, 1
      %p117 = por %p115, %p116
      %p119 = scmp.ne.s32.totalorder %s104, %s118
      %p120 = scmp.eq.s32.totalorder %s26, 0
      %p121 = por %p119, %p120
      %s123 = sadd.s32 %s122, 1
      %p126 = scmp.eq.s32.totalorder %s20, 1
      %p127 = scmp.ne.s32.totalorder %s122, %s124
      %p128 = scmp.eq.s32.totalorder %s20, 0
      %p129 = por %p127, %p128
      %p130 = scmp.ne.s32.totalorder %s122, %s124
      %p131 = scmp.eq.s32.totalorder %s25, 1
      %p132 = por %p130, %p131
      %p133 = scmp.ne.s32.totalorder %s124, %s125
      %p134 = scmp.eq.s32.totalorder %s25, 0
      %p135 = por %p133, %p134
      %p136 = scmp.ne.s32.totalorder %s124, %s125
      %p137 = scmp.eq.s32.totalorder %s26, 1
      %p138 = por %p136, %p137
      %p140 = scmp.ne.s32.totalorder %s125, %s139
      %p141 = scmp.eq.s32.totalorder %s26, 0
      %p142 = por %p140, %p141
      %s143 = ssub.s32 %s20, %s27
      %p144 = scmp.eq.s32.totalorder %s143, 0
      %s146 = sadd.s32 %s145, 1
      %s147 = scalar_select %p144, %s145, %s146
      %p150 = pneg %p144
      %p151 = scmp.eq.s32.totalorder %s20, 1
      %p152 = por %p150, %p151
      %p153 = scmp.ne.s32.totalorder %s145, %s148
      %p154 = scmp.eq.s32.totalorder %s20, 0
      %p155 = por %p153, %p154
      %p156 = scmp.ne.s32.totalorder %s145, %s148
      %p157 = scmp.eq.s32.totalorder %s25, 1
      %p158 = por %p156, %p157
      %p159 = scmp.ne.s32.totalorder %s148, %s149
      %p160 = scmp.eq.s32.totalorder %s25, 0
      %p161 = por %p159, %p160
      %p162 = scmp.ne.s32.totalorder %s148, %s149
      %p163 = scmp.eq.s32.totalorder %s26, 1
      %p164 = por %p162, %p163
      %p166 = scmp.ne.s32.totalorder %s149, %s165
      %p167 = scmp.eq.s32.totalorder %s26, 0
      %p168 = por %p166, %p167
      %p169 = scmp.le.s32.totalorder 1, %s20
      %p170 = scmp.lt.s32.totalorder %s20, 3
      %p171 = pnand %p169, %p170
      %p172 = pneg %p171
      // Predicated region
      $region9: #{tpu_custom_call.1} parent=5 // pred_check
        _
      $region10: #{tpu_custom_call.1} parent=5 // pred_check_branch
        %174 = sbr.rel (%p171) target = $region12
      $region11: #{tpu_custom_call.1} parent=5 // pred_region
        %s175 = ssub.s32 %s20, 1
        // Predicated region
        $region13: #{tpu_custom_call.1} parent=11 // pred_check
          %p176 = pneg %p93
        $region14: #{tpu_custom_call.1} parent=11 // pred_check_branch
          %178 = sbr.rel (%p176) target = $region16
        $region15: #{tpu_custom_call.1} parent=11 // pred_region
          _
        $region16: #{tpu_custom_call.1} parent=11 // pred_fallthru
          _
        // Predicated region
        $region17: #{tpu_custom_call.1} parent=11 // pred_check
          %p179 = pneg %p114
        $region18: #{tpu_custom_call.1} parent=11 // pred_check_branch
          %181 = sbr.rel (%p179) target = $region20
        $region19: #{tpu_custom_call.1} parent=11 // pred_region
          _
        $region20: #{tpu_custom_call.1} parent=11 // pred_fallthru
          _
        // Predicated region
        $region21: #{tpu_custom_call.1} parent=11 // pred_check
          %p182 = pneg %p135
        $region22: #{tpu_custom_call.1} parent=11 // pred_check_branch
          %184 = sbr.rel (%p182) target = $region24
        $region23: #{tpu_custom_call.1} parent=11 // pred_region
          _
        $region24: #{tpu_custom_call.1} parent=11 // pred_fallthru
          _
      $region12: #{tpu_custom_call.1} parent=5 // pred_fallthru
        _
      %p185 = scmp.lt.s32.totalorder %s20, 2
      // Predicated region
      $region25: #{tpu_custom_call.1} parent=5 // pred_check
        %p186 = pneg %p185
      $region26: #{tpu_custom_call.1} parent=5 // pred_check_branch
        %188 = sbr.rel (%p186) target = $region28
      $region27: #{tpu_custom_call.1} parent=5 // pred_region
        // Predicated region
        $region29: #{tpu_custom_call.1} parent=27 // pred_check
          %p189 = pneg %p40
        $region30: #{tpu_custom_call.1} parent=27 // pred_check_branch
          %191 = sbr.rel (%p189) target = $region32
        $region31: #{tpu_custom_call.1} parent=27 // pred_region
          %s192 = sand.u32 %s30, 1
          %s193 = scalar_lea.sflag [#allocation3], %s192
          %s194 = sand.u32 %s30, 1
          %s195 = smul.addr %s194, 8
          %s196 = scalar_lea.vmem [#allocation2], %s195
          %s198 = ssub.s32 128, 128
          %199 = vsyncadd %s193, %s198
          %s200 = smul.addr %s20, 2
          %s201 = smul.addr %s200, 64
          %s202 = scalar_lea.hbm %s0, %s201
          %s204 = sshll.u32 %s196, 4
          %s205 = int_to_ptr.vmem [resolvable:$true] %s204
          %207 = dma.hbm_to_vmem [thread:$0]  %s202, 128, %s205, %s193
        $region32: #{tpu_custom_call.1} parent=27 // pred_fallthru
          _
        // Predicated region
        $region33: #{tpu_custom_call.1} parent=27 // pred_check
          %p208 = pneg %p66
        $region34: #{tpu_custom_call.1} parent=27 // pred_check_branch
          %210 = sbr.rel (%p208) target = $region36
        $region35: #{tpu_custom_call.1} parent=27 // pred_region
          %s211 = sand.u32 %s56, 1
          %s212 = scalar_lea.sflag [#allocation6], %s211
          %s213 = sand.u32 %s56, 1
          %s214 = smul.addr %s213, 8
          %s215 = scalar_lea.vmem [#allocation5], %s214
          %s217 = ssub.s32 128, 128
          %218 = vsyncadd %s212, %s217
          %s219 = smul.addr %s20, 2
          %s220 = smul.addr %s219, 64
          %s221 = scalar_lea.hbm %s1, %s220
          %s223 = sshll.u32 %s215, 4
          %s224 = int_to_ptr.vmem [resolvable:$true] %s223
          %226 = dma.hbm_to_vmem [thread:$0]  %s221, 128, %s224, %s212
        $region36: #{tpu_custom_call.1} parent=27 // pred_fallthru
          _
      $region28: #{tpu_custom_call.1} parent=5 // pred_fallthru
        _
      %p227 = scmp.le.s32.totalorder 1, %s20
      %p228 = scmp.lt.s32.totalorder %s20, 3
      %p229 = pnand %p227, %p228
      %p230 = pneg %p229
      // Predicated region
      $region37: #{tpu_custom_call.1} parent=5 // pred_check
        _
      $region38: #{tpu_custom_call.1} parent=5 // pred_check_branch
        %232 = sbr.rel (%p229) target = $region40
      $region39: #{tpu_custom_call.1} parent=5 // pred_region
        %s233 = ssub.s32 %s20, 1
        %s234 = sand.u32 %s33, 1
        %s235 = scalar_lea.sflag [#allocation3], %s234
        %s236 = sand.u32 %s33, 1
        %s237 = smul.addr %s236, 8
        %s238 = scalar_lea.vmem [#allocation2], %s237
        // Predicated region
        $region41: #{tpu_custom_call.1} parent=39 // pred_check
          %p239 = pneg %p46
        $region42: #{tpu_custom_call.1} parent=39 // pred_check_branch
          %241 = sbr.rel (%p239) target = $region44
        $region43: #{tpu_custom_call.1} parent=39 // pred_region
          %242 = dma.done %s235, 128
        $region44: #{tpu_custom_call.1} parent=39 // pred_fallthru
          _
        %s243 = sand.u32 %s59, 1
        %s244 = scalar_lea.sflag [#allocation6], %s243
        %s245 = sand.u32 %s59, 1
        %s246 = smul.addr %s245, 8
        %s247 = scalar_lea.vmem [#allocation5], %s246
        // Predicated region
        $region45: #{tpu_custom_call.1} parent=39 // pred_check
          %p248 = pneg %p72
        $region46: #{tpu_custom_call.1} parent=39 // pred_check_branch
          %250 = sbr.rel (%p248) target = $region48
        $region47: #{tpu_custom_call.1} parent=39 // pred_region
          %251 = dma.done %s244, 128
        $region48: #{tpu_custom_call.1} parent=39 // pred_fallthru
          _
        %s252 = sand.u32 %s33, 1
        %s253 = scalar_lea.sflag [#allocation3], %s252
        %s254 = sand.u32 %s33, 1
        %s255 = smul.addr %s254, 8
        %s256 = scalar_lea.vmem [#allocation2], %s255
        %p257 = pneg %p46
        %p258 = pneg %p43
        %s259 = sand.u32 %s59, 1
        %s260 = scalar_lea.sflag [#allocation6], %s259
        %s261 = sand.u32 %s59, 1
        %s262 = smul.addr %s261, 8
        %s263 = scalar_lea.vmem [#allocation5], %s262
        %p264 = pneg %p72
        %p265 = pneg %p69
        %p266 = pneg %p93
        %p267 = pneg %p90
        %p268 = pneg %p114
        %p269 = pneg %p111
        %p270 = pneg %p135
        %p271 = pneg %p132
        %p272 = pneg %p161
        %p273 = pneg %p158
        %s274 = sand.u32 %s148, 1
        %s275 = scalar_lea.sflag [#allocation4], %s274
        %s276 = sand.u32 %s148, 1
        %s277 = smul.addr %s276, 8
        %s278 = scalar_lea.vmem [#allocation7], %s277
        %v279 = vld [vmem:[%s2] sm:$0x3]
        %v280 = vld [vmem:[%s238] sm:$0xff]
        %vm281 = vcmp.gt.f32.partialorder %v280, 0.0
        %v282 = vmul.f32 %v280, 0.01
        %v283 = vsel %vm281, %v280, %v282
        %v284 = vld [vmem:[%s247] sm:$0xff]
        %vm285 = vcmp.gt.f32.partialorder %v284, 0.0
        %v286 = vmul.f32 %v284, 0.01
        %v287 = vsel %vm285, %v284, %v286
        %v289 = vcombine.high %v283, %v283
        %vm290 = vcmask 31744
        %v292 = vsel %vm290, %v279, 0
        %vm294 = vcmask 1043456
        %v295 = vsel %vm294, %v283, 0
        %v297 = vsel %vm294, %v289, 0
        %299 = vmatprep.subr.mxu0 %v297
        %300 = vmatpush1.msra.mxu0 %v295
        %301 = vmatprep.subr.mxu0 0.0
        %302 = vmatpush1.msra.mxu0 0.0
        %303 = vmatprep.subr.mxu0 0.0
        %304 = vmatpush1.msra.mxu0 0.0
        %305 = vmatprep.subr.mxu0 0.0
        %306 = vmatpush1.msra.mxu0 0.0
        %307 = vmatprep.subr.mxu0 0.0
        %308 = vmatpush1.msra.mxu0 0.0
        %309 = vmatprep.subr.mxu0 0.0
        %310 = vmatpush1.msra.mxu0 0.0
        %311 = vmatprep.subr.mxu0 0.0
        %312 = vmatpush1.msra.mxu0 0.0
        %313 = vmatprep.subr.mxu0 0.0
        %314 = vmatpush1.msra.mxu0 0.0
        %315 = vmatprep.subr.mxu0 0.0
        %316 = vmatpush1.msra.mxu0 0.0
        %317 = vmatprep.subr.mxu0 0.0
        %318 = vmatpush1.msra.mxu0 0.0
        %319 = vmatprep.subr.mxu0 0.0
        %320 = vmatpush1.msra.mxu0 0.0
        %321 = vmatprep.subr.mxu0 0.0
        %322 = vmatpush1.msra.mxu0 0.0
        %323 = vmatprep.subr.mxu0 0.0
        %324 = vmatpush1.msra.mxu0 0.0
        %325 = vmatprep.subr.mxu0 0.0
        %326 = vmatpush1.msra.mxu0 0.0
        %327 = vmatprep.subr.mxu0 0.0
        %328 = vmatpush1.msra.mxu0 0.0
        %329 = vmatprep.subr.mxu0 0.0
        %330 = vmatpush1.msra.mxu0 0.0
        %331 = vmatprep.subr.mxu0 0.0
        %332 = vmatpush1.msra.mxu0 0.0
        %333 = vmatprep.subr.mxu0 0.0
        %334 = vmatpush1.msra.mxu0 0.0
        %335 = vmatprep.subr.mxu0 0.0
        %336 = vmatpush1.msra.mxu0 0.0
        %337 = vmatprep.subr.mxu0 0.0
        %338 = vmatpush1.msra.mxu0 0.0
        %339 = vmatprep.subr.mxu0 0.0
        %340 = vmatpush1.msra.mxu0 0.0
        %341 = vmatprep.subr.mxu0 0.0
        %342 = vmatpush1.msra.mxu0 0.0
        %343 = vmatprep.subr.mxu0 0.0
        %344 = vmatpush1.msra.mxu0 0.0
        %345 = vmatprep.subr.mxu0 0.0
        %346 = vmatpush1.msra.mxu0 0.0
        %347 = vmatprep.subr.mxu0 0.0
        %348 = vmatpush1.msra.mxu0 0.0
        %349 = vmatprep.subr.mxu0 0.0
        %350 = vmatpush1.msra.mxu0 0.0
        %351 = vmatprep.subr.mxu0 0.0
        %352 = vmatpush1.msra.mxu0 0.0
        %353 = vmatprep.subr.mxu0 0.0
        %354 = vmatpush1.msra.mxu0 0.0
        %355 = vmatprep.subr.mxu0 0.0
        %356 = vmatpush1.msra.mxu0 0.0
        %357 = vmatprep.subr.mxu0 0.0
        %358 = vmatpush1.msra.mxu0 0.0
        %359 = vmatprep.subr.mxu0 0.0
        %360 = vmatpush1.msra.mxu0 0.0
        %361 = vmatprep.subr.mxu0 0.0
        %362 = vmatpush1.msra.mxu0 0.0
        %363 = vmatprep.mubr.f32.mxu0 0.0
        %364 = vmatmul.mubr.f32.gmra.mrb[0].mxu0 %v292
        %v365 = vpop.f32.mrb[0].mxu0
        %v366 = vadd.f32 0.0, %v365
        %v367 = vpop.f32.mrb[0].mxu0
        %v368 = vadd.f32 0.0, %v367
        %369 = vdwg.mxu0
        %v371 = vcombine.high %v287, %v287
        %v372 = vsel %vm294, %v287, 0
        %v374 = vsel %vm294, %v371, 0
        %376 = vmatprep.subr.mxu0 %v374
        %377 = vmatpush1.msra.mxu0 %v372
        %378 = vmatprep.subr.mxu0 0.0
        %379 = vmatpush1.msra.mxu0 0.0
        %380 = vmatprep.subr.mxu0 0.0
        %381 = vmatpush1.msra.mxu0 0.0
        %382 = vmatprep.subr.mxu0 0.0
        %383 = vmatpush1.msra.mxu0 0.0
        %384 = vmatprep.subr.mxu0 0.0
        %385 = vmatpush1.msra.mxu0 0.0
        %386 = vmatprep.subr.mxu0 0.0
        %387 = vmatpush1.msra.mxu0 0.0
        %388 = vmatprep.subr.mxu0 0.0
        %389 = vmatpush1.msra.mxu0 0.0
        %390 = vmatprep.subr.mxu0 0.0
        %391 = vmatpush1.msra.mxu0 0.0
        %392 = vmatprep.subr.mxu0 0.0
        %393 = vmatpush1.msra.mxu0 0.0
        %394 = vmatprep.subr.mxu0 0.0
        %395 = vmatpush1.msra.mxu0 0.0
        %396 = vmatprep.subr.mxu0 0.0
        %397 = vmatpush1.msra.mxu0 0.0
        %398 = vmatprep.subr.mxu0 0.0
        %399 = vmatpush1.msra.mxu0 0.0
        %400 = vmatprep.subr.mxu0 0.0
        %401 = vmatpush1.msra.mxu0 0.0
        %402 = vmatprep.subr.mxu0 0.0
        %403 = vmatpush1.msra.mxu0 0.0
        %404 = vmatprep.subr.mxu0 0.0
        %405 = vmatpush1.msra.mxu0 0.0
        %406 = vmatprep.subr.mxu0 0.0
        %407 = vmatpush1.msra.mxu0 0.0
        %408 = vmatprep.subr.mxu0 0.0
        %409 = vmatpush1.msra.mxu0 0.0
        %410 = vmatprep.subr.mxu0 0.0
        %411 = vmatpush1.msra.mxu0 0.0
        %412 = vmatprep.subr.mxu0 0.0
        %413 = vmatpush1.msra.mxu0 0.0
        %414 = vmatprep.subr.mxu0 0.0
        %415 = vmatpush1.msra.mxu0 0.0
        %416 = vmatprep.subr.mxu0 0.0
        %417 = vmatpush1.msra.mxu0 0.0
        %418 = vmatprep.subr.mxu0 0.0
        %419 = vmatpush1.msra.mxu0 0.0
        %420 = vmatprep.subr.mxu0 0.0
        %421 = vmatpush1.msra.mxu0 0.0
        %422 = vmatprep.subr.mxu0 0.0
        %423 = vmatpush1.msra.mxu0 0.0
        %424 = vmatprep.subr.mxu0 0.0
        %425 = vmatpush1.msra.mxu0 0.0
        %426 = vmatprep.subr.mxu0 0.0
        %427 = vmatpush1.msra.mxu0 0.0
        %428 = vmatprep.subr.mxu0 0.0
        %429 = vmatpush1.msra.mxu0 0.0
        %430 = vmatprep.subr.mxu0 0.0
        %431 = vmatpush1.msra.mxu0 0.0
        %432 = vmatprep.subr.mxu0 0.0
        %433 = vmatpush1.msra.mxu0 0.0
        %434 = vmatprep.subr.mxu0 0.0
        %435 = vmatpush1.msra.mxu0 0.0
        %436 = vmatprep.subr.mxu0 0.0
        %437 = vmatpush1.msra.mxu0 0.0
        %438 = vmatprep.subr.mxu0 0.0
        %439 = vmatpush1.msra.mxu0 0.0
        %440 = vmatprep.mubr.f32.mxu0 0.0
        %441 = vmatmul.mubr.f32.gmra.mrb[0].mxu0 %v292
        %v442 = vpop.f32.mrb[0].mxu0
        %v443 = vadd.f32 0.0, %v442
        %v444 = vpop.f32.mrb[0].mxu0
        %v445 = vadd.f32 0.0, %v444
        %446 = vdwg.mxu0
        %v449 = vrot.slane %v443, 6
        %v450 = vrot.slane %v445, 6
        %vm453 = vcmask 1041408
        %v454 = vsel %vm453, %v366, %v449
        %v455 = vsel %vm453, %v368, %v450
        %v456 = vsel %vm294, %v454, 0.0
        %v457 = vsel %vm294, %v455, 0.0
        %v458 = vadd.f32 %v456, %v457
        %459 = vadd.xlane.f32.xlu0 %v458
        %v460 = vpop.xlane.xlu0 %459
        %v461 = vmul.f32 %v454, %v454
        %v462 = vmul.f32 %v455, %v455
        %v463 = vsel %vm294, %v461, 0.0
        %v464 = vsel %vm294, %v462, 0.0
        %v465 = vadd.f32 %v463, %v464
        %466 = vadd.xlane.f32.xlu0 %v465
        %v467 = vpop.xlane.xlu0 %466
        %v468 = vmul.f32 %v460, 0.00390625
        %v469 = vmul.f32 %v467, 0.00390625
        %v470 = vmul.f32 %v468, %v468
        %v471 = vsub.f32 %v469, %v470
        %v472 = vmax.f32 %v471, 0.0
        %v473 = vsub.f32 %v454, %v468
        %v474 = vsub.f32 %v455, %v468
        %v475 = vadd.f32 %v472, 1e-05
        %v476 = vrsqrt.pop %v475
        %v477 = vmul.f32 %v473, %v476
        %v478 = vmul.f32 %v474, %v476
        %v479 = vld [vmem:[%s3] sm:$0xf]
        %481 = vset.pattern.permute.xlu0 0
        %482 = vperm.xlu0 %481, %v479
        %v483 = vpop.permute.xlu0 %482
        %v485 = vmul.f32 %v477, %v483
        %v486 = vmul.f32 %v478, %v483
        %v487 = vld [vmem:[%s4] sm:$0xf]
        %489 = vset.pattern.permute.xlu0 0
        %490 = vperm.xlu0 %489, %v487
        %v491 = vpop.permute.xlu0 %490
        %v493 = vadd.f32 %v485, %v491
        %v494 = vadd.f32 %v486, %v491
        %vm495 = vcmp.gt.f32.partialorder %v493, 0.0
        %vm496 = vcmp.gt.f32.partialorder %v494, 0.0
        %v497 = vmul.f32 %v493, 0.01
        %v498 = vmul.f32 %v494, 0.01
        %v499 = vsel %vm495, %v493, %v497
        %v500 = vsel %vm496, %v494, %v498
        %v503 = vcombine.low %v499, %v500
        %505 = vst [vmem:[%s278] sm:$0xff] %v503
        %s506 = sand.u32 %s148, 1
        %s507 = scalar_lea.sflag [#allocation4], %s506
        %s508 = sand.u32 %s148, 1
        %s509 = smul.addr %s508, 8
        %s510 = scalar_lea.vmem [#allocation7], %s509
        // Predicated region
        $region49: #{tpu_custom_call.1} parent=39 // pred_check
          %p511 = pneg %p158
        $region50: #{tpu_custom_call.1} parent=39 // pred_check_branch
          %513 = sbr.rel (%p511) target = $region52
        $region51: #{tpu_custom_call.1} parent=39 // pred_region
          %s515 = ssub.s32 128, 128
          %516 = vsyncadd %s507, %s515
          %s517 = smul.addr %s25, 2
          %s518 = smul.addr %s517, 64
          %s519 = scalar_lea.hbm %s5, %s518
          %s521 = sshll.u32 %s510, 4
          %s522 = int_to_ptr.vmem [resolvable:$true] %s521
          %524 = dma.vmem_to_hbm [thread:$0]  %s522, 128, %s519, %s507
        $region52: #{tpu_custom_call.1} parent=39 // pred_fallthru
          _
      $region40: #{tpu_custom_call.1} parent=5 // pred_fallthru
        _
      %p525 = scmp.le.s32.totalorder 2, %s20
      // Predicated region
      $region53: #{tpu_custom_call.1} parent=5 // pred_check
        %p526 = pneg %p525
      $region54: #{tpu_custom_call.1} parent=5 // pred_check_branch
        %528 = sbr.rel (%p526) target = $region56
      $region55: #{tpu_custom_call.1} parent=5 // pred_region
        %s529 = ssub.s32 %s20, 2
        // Predicated region
        $region57: #{tpu_custom_call.1} parent=55 // pred_check
          %p530 = pneg %p164
        $region58: #{tpu_custom_call.1} parent=55 // pred_check_branch
          %532 = sbr.rel (%p530) target = $region60
        $region59: #{tpu_custom_call.1} parent=55 // pred_region
          %s533 = sand.u32 %s149, 1
          %s534 = scalar_lea.sflag [#allocation4], %s533
          %s535 = sand.u32 %s149, 1
          %s536 = smul.addr %s535, 8
          %s537 = scalar_lea.vmem [#allocation7], %s536
          %538 = dma.done %s534, 128
        $region60: #{tpu_custom_call.1} parent=55 // pred_fallthru
          _
      $region56: #{tpu_custom_call.1} parent=5 // pred_fallthru
        _
    $region6: #{tpu_custom_call.1} parent=1 // loop_footer
      %s24 = sadd.s32 1, %s20
    $region7: #{tpu_custom_call.1} parent=1 // loop_footer_branch
      %19 = sbr.rel target = $region3
    $region8: #{tpu_custom_call.1} parent=1 // loop_exit
      _
    %539 = vsyncpa [#allocation3], 1
    %s540 = scalar_lea.sflag [#allocation3], 1
    %541 = vsyncpa %s540, 1
    %542 = vsyncpa [#allocation6], 1
    %s543 = scalar_lea.sflag [#allocation6], 1
    %544 = vsyncpa %s543, 1
    %545 = vsyncpa [#allocation4], 1
    %s546 = scalar_lea.sflag [#allocation4], 1
    %547 = vsyncpa %s546, 1

</llo_original>
